<compile_context>
chip_gen: v5e
topology: v5e:2x2
jax: 0.10.0
libtpu: 0.0.40
codegen_flags: <defaults>
</compile_context>

<pallas_src>
import functools
import math
from typing import NamedTuple

import jax
import jax.numpy as jnp
from jax.experimental import pallas as pl
from jax.experimental.pallas import tpu as pltpu


def _round_up(x, m):
    return (x + m - 1) // m * m


class Dims(NamedTuple):
    E: int    # embedding size
    H: int    # hidden size
    V: int    # target vocab size
    Ep: int   # padded embedding size (128-lane multiple)
    Hp: int   # padded hidden size
    Dp: int   # padded encoder feature size (2H + 1 ones-column, 128-lane multiple)
    Vp: int   # padded vocab size


# --------------------------------------------------------------------------------------
# Small helpers
# --------------------------------------------------------------------------------------
def _nbytes(x):
    return math.prod(x.shape) * x.dtype.itemsize


def _vmem_limit(resident_bytes):
    """Explicit scoped-VMEM budget sized to the resident set (1.5x + headroom),
    floored at 32 MiB (always safe, <= v7x physical) and capped at 128 MiB."""
    want = int(1.5 * resident_bytes) + (4 << 20)
    return int(min(128 << 20, max(32 << 20, want)))


def _vmem_spec():
    return pl.BlockSpec(memory_space=pltpu.MemorySpace.VMEM)


def _resident_spec(shape):
    """Grid-invariant operand: constant index map + single buffering (no benefit from
    double-buffering an operand whose block never changes; halves its VMEM footprint)."""
    if len(shape) == 2:
        imap = lambda t: (0, 0)
    else:
        imap = lambda t: (0, 0, 0)
    return pl.BlockSpec(shape, imap, pipeline_mode=pl.Buffered(1))


def _pad_rows_cols(x, rows, cols):
    return jnp.pad(x, ((0, rows - x.shape[0]), (0, cols - x.shape[1])))


# --------------------------------------------------------------------------------------
# Shared per-step math (traced inside both recurrent kernels)
# --------------------------------------------------------------------------------------
def _attn_lstm_cell(xemb, enc, ep, h, c, whh_ext, wih_ctx, wih_emb, b):
    """One attention + LSTM-cell step on padded, lane-dense blocks.

    xemb: (Bp, Ep)       enc: (S, Bp, Dp)     ep: (S, Bp, 1) hoisted enc energy proj
    h, c: (Bp, Hp)
    whh_ext: (Hp, 4Hp+128)  [cols 0:4Hp = LSTM w_hh; col 4Hp = folded energy w_h]
    wih_ctx: (Dp, 4Hp)   wih_emb: (Ep, 4Hp)   b: (1, 4Hp)
    """
    f32 = jnp.float32
    Hp = h.shape[1]
    G = 4 * Hp

    # Recurrent gate term and the energy h-projection in ONE MXU pass (w_h folded in).
    gh = jnp.dot(h.astype(whh_ext.dtype), whh_ext, preferred_element_type=f32)  # (Bp, 4Hp+128)
    hp = gh[:, G:G + 1]                                                          # (Bp, 1)

    # Attention energies + softmax over the sequence axis (dim 0 in the PyTorch code).
    # ep was hoisted out of the loop (only depends on encoder_states / w_e).
    energy = jnp.maximum(ep + hp[None, :, :], 0.0)                               # relu, (S,Bp,1)
    m = jnp.max(energy, axis=0, keepdims=True)
    e = jnp.exp(energy - m)
    att = e / jnp.sum(e, axis=0, keepdims=True)                                  # (S, Bp, 1)

    # context = einsum('snk,snl->knl', attention, encoder_states)
    ctx = jnp.sum(att * enc, axis=0)                                             # (Bp, Dp)

    # LSTM cell: split-weight gates (no (Bp, Dp+Ep) concat copy); every gate slice is a
    # full Hp-aligned lane group.  [i, f, g, o] PyTorch gate order.
    gates = (jnp.dot(ctx.astype(wih_ctx.dtype), wih_ctx, preferred_element_type=f32)
             + jnp.dot(xemb.astype(wih_emb.dtype), wih_emb, preferred_element_type=f32)
             + gh[:, :G] + b)                                                    # (Bp, 4Hp)
    i = jax.nn.sigmoid(gates[:, 0 * Hp:1 * Hp])
    f = jax.nn.sigmoid(gates[:, 1 * Hp:2 * Hp])
    g = jnp.tanh(gates[:, 2 * Hp:3 * Hp])
    o = jax.nn.sigmoid(gates[:, 3 * Hp:4 * Hp])
    c_new = f * c + i * g
    h_new = o * jnp.tanh(c_new)
    return h_new, c_new


# --------------------------------------------------------------------------------------
# Kernels
# --------------------------------------------------------------------------------------
def _decoder_step_kernel(xemb_ref, enc_ref, ep_ref, h_ref, c_ref,
                         whh_ref, wihc_ref, wihe_ref, b_ref,
                         hout_ref, cout_ref):
    h_new, c_new = _attn_lstm_cell(
        xemb_ref[...], enc_ref[...], ep_ref[...], h_ref[...], c_ref[...],
        whh_ref[...], wihc_ref[...], wihe_ref[...], b_ref[...])
    hout_ref[...] = h_new
    cout_ref[...] = c_new


def _decoder_loop_kernel(xembs_ref, enc_ref, ep_ref, h0_ref, c0_ref,
                         whh_ref, wihc_ref, wihe_ref, b_ref,
                         hs_ref, cT_ref,
                         h_sc, c_sc):
    t = pl.program_id(0)

    @pl.when(t == 0)
    def _():
        h_sc[...] = h0_ref[...]
        c_sc[...] = c0_ref[...]

    h_new, c_new = _attn_lstm_cell(
        xembs_ref[0], enc_ref[...], ep_ref[...], h_sc[...], c_sc[...],
        whh_ref[...], wihc_ref[...], wihe_ref[...], b_ref[...])
    hs_ref[0] = h_new           # per-step hidden (consumed by the deferred vocab proj)
    h_sc[...] = h_new
    c_sc[...] = c_new

    @pl.when(t == pl.num_programs(0) - 1)
    def _():
        cT_ref[...] = c_new     # only the last cell state is needed


def _vocab_proj_kernel(h_ref, wfc_ref, bfc_ref, out_ref):
    out_ref[...] = (jnp.dot(h_ref[...].astype(wfc_ref.dtype), wfc_ref[...],
                            preferred_element_type=jnp.float32) + bfc_ref[...])


# --------------------------------------------------------------------------------------
# pallas_call wrappers
# --------------------------------------------------------------------------------------
def _decoder_step_call(params, dims, xemb, enc, ep, h, c):
    Bp, Hp = h.shape
    args = (xemb, enc, ep, h, c, params["whh_ext"], params["wih_ctx"],
            params["wih_emb"], params["b"])
    resident = sum(_nbytes(a) for a in args) + 2 * Bp * Hp * 4
    return pl.pallas_call(
        _decoder_step_kernel,
        out_shape=(jax.ShapeDtypeStruct((Bp, Hp), jnp.float32),
                   jax.ShapeDtypeStruct((Bp, Hp), jnp.float32)),
        in_specs=[_vmem_spec() for _ in range(len(args))],
        out_specs=(_vmem_spec(), _vmem_spec()),
        compiler_params=pltpu.CompilerParams(vmem_limit_bytes=_vmem_limit(resident)),
    )(*args)


def _decoder_loop_call(params, dims, xembs, enc, ep, h0, c0):
    T, Bp, Ep = xembs.shape
    S = enc.shape[0]
    Dp, Hp = dims.Dp, dims.Hp
    G = params["b"].shape[1]
    GE = params["whh_ext"].shape[1]

    resident = (sum(_nbytes(a) for a in
                    (enc, ep, h0, c0, params["whh_ext"], params["wih_ctx"],
                     params["wih_emb"], params["b"]))
                + 2 * (Bp * Ep + Bp * Hp) * 4      # double-buffered per-step blocks
                + 3 * Bp * Hp * 4)                 # cT output + h/c scratch

    return pl.pallas_call(
        _decoder_loop_kernel,
        out_shape=(jax.ShapeDtypeStruct((T, Bp, Hp), jnp.float32),
                   jax.ShapeDtypeStruct((Bp, Hp), jnp.float32)),
        grid=(T,),
        in_specs=[
            pl.BlockSpec((1, Bp, Ep), lambda t: (t, 0, 0)),  # per-step input embedding
            _resident_spec((S, Bp, Dp)),                     # encoder states (resident)
            _resident_spec((S, Bp, 1)),                      # hoisted encoder energy proj
            _resident_spec((Bp, Hp)),                        # h0
            _resident_spec((Bp, Hp)),                        # c0
            _resident_spec((Hp, GE)),                        # w_hh ++ folded energy w_h
            _resident_spec((Dp, G)),                         # w_ih (context half)
            _resident_spec((Ep, G)),                         # w_ih (embedding half)
            _resident_spec((1, G)),                          # LSTM bias (b_ih + b_hh)
        ],
        out_specs=(
            pl.BlockSpec((1, Bp, Hp), lambda t: (t, 0, 0)),  # per-step hidden states
            pl.BlockSpec((Bp, Hp), lambda t: (0, 0)),        # final cell (resident)
        ),
        scratch_shapes=[pltpu.VMEM((Bp, Hp), jnp.float32),
                        pltpu.VMEM((Bp, Hp), jnp.float32)],
        # The recurrent axis must stay "arbitrary": hidden/cell are carried in VMEM
        # scratch across grid steps.
        compiler_params=pltpu.CompilerParams(
            dimension_semantics=("arbitrary",),
            vmem_limit_bytes=_vmem_limit(resident)),
    )(xembs, enc, ep, h0, c0, params["whh_ext"], params["wih_ctx"],
      params["wih_emb"], params["b"])


def _vocab_proj_call(params, dims, h_flat):
    """Deferred, Vp-tiled vocab projection: (M, Hp) @ (Hp, Vp) + bias on a parallel grid."""
    M, Hp = h_flat.shape
    Vp = dims.Vp
    TV = 128
    for cand in (2048, 1024, 512, 256, 128):
        if Vp % cand == 0:
            TV = cand
            break
    wfc, bfc = params["wfc"], params["bfc"]
    wbytes = wfc.dtype.itemsize
    resident = _nbytes(h_flat) + 2 * (Hp * TV * wbytes + TV * 4 + M * TV * 4)
    return pl.pallas_call(
        _vocab_proj_kernel,
        out_shape=jax.ShapeDtypeStruct((M, Vp), jnp.float32),
        grid=(Vp // TV,),
        in_specs=[
            pl.BlockSpec((M, Hp), lambda j: (0, 0), pipeline_mode=pl.Buffered(1)),
            pl.BlockSpec((Hp, TV), lambda j: (0, j)),
            pl.BlockSpec((1, TV), lambda j: (0, j)),
        ],
        out_specs=pl.BlockSpec((M, TV), lambda j: (0, j)),
        compiler_params=pltpu.CompilerParams(
            dimension_semantics=("parallel",),
            vmem_limit_bytes=_vmem_limit(resident)),
    )(h_flat, wfc, bfc)


# --------------------------------------------------------------------------------------
# Public forward functions (mirror Decoder.forward semantics)
# --------------------------------------------------------------------------------------
def _prepare_attention_inputs(encoder_states, w_e, dims, Bp):
    """Pad (S, B, 2H) -> (S, Bp, Dp) with a constant-one column (carries the folded
    energy bias) and hoist the encoder-side energy projection ep = enc @ w_e."""
    S, B, _ = encoder_states.shape
    enc = jnp.pad(encoder_states.astype(jnp.float32),
                  ((0, 0), (0, Bp - B), (0, dims.Dp - 2 * dims.H)))
    enc = enc.at[:, :, 2 * dims.H].set(1.0)
    ep = jnp.einsum("sbd,d->sb", enc, w_e.astype(jnp.float32))[:, :, None]  # (S, Bp, 1)
    return enc, ep


@functools.partial(jax.jit, static_argnames=("dims",))
def decoder_forward(params, dims, x, encoder_states, hidden, cell):
    """Pallas equivalent of Decoder.forward.

    x: (B,) int32, encoder_states: (S, B, 2H) f32, hidden/cell: (1, B, H) f32.
    Returns (predictions (B, V), hidden (1, B, H), cell (1, B, H)).
    """
    S, B, _ = encoder_states.shape
    Bp = _round_up(B, 8)
    xemb = _pad_rows_cols(params["emb"][x], Bp, dims.Ep)       # dropout(p=0) == identity
    enc, ep = _prepare_attention_inputs(encoder_states, params["w_e"], dims, Bp)
    h = _pad_rows_cols(hidden[0].astype(jnp.float32), Bp, dims.Hp)
    c = _pad_rows_cols(cell[0].astype(jnp.float32), Bp, dims.Hp)
    h1, c1 = _decoder_step_call(params, dims, xemb, enc, ep, h, c)
    pred = _vocab_proj_call(params, dims, h1)                  # (Bp, Vp)
    return (pred[:B, :dims.V],
            h1[:B, :dims.H][None, :, :],
            c1[:B, :dims.H][None, :, :])


@functools.partial(jax.jit, static_argnames=("dims",))
def decoder_teacher_forced(params, dims, tokens, encoder_states, hidden, cell):
    """T teacher-forced Decoder steps: one grid=(T,) recurrent kernel (hidden/cell in
    VMEM scratch, encoder states / energies / weights resident, single-buffered) plus
    one deferred Vp-tiled vocab projection over all T*B hidden states.

    tokens: (T, B) int32, encoder_states: (S, B, 2H), hidden/cell: (1, B, H).
    Returns (predictions (T, B, V), hidden, cell).
    """
    T, B = tokens.shape
    Bp = _round_up(B, 8)
    xembs = jnp.pad(params["emb"][tokens], ((0, 0), (0, Bp - B), (0, 0)))
    enc, ep = _prepare_attention_inputs(encoder_states, params["w_e"], dims, Bp)
    h0 = _pad_rows_cols(hidden[0].astype(jnp.float32), Bp, dims.Hp)
    c0 = _pad_rows_cols(cell[0].astype(jnp.float32), Bp, dims.Hp)
    hs, cT = _decoder_loop_call(params, dims, xembs, enc, ep, h0, c0)   # (T, Bp, Hp)
    preds = _vocab_proj_call(params, dims, hs.reshape(T * Bp, dims.Hp))
    preds = preds.reshape(T, Bp, dims.Vp)
    return (preds[:, :B, :dims.V],
            hs[T - 1, :B, :dims.H][None, :, :],
            cT[:B, :dims.H][None, :, :])


# --------------------------------------------------------------------------------------
# Parameters: raw (PyTorch-layout) init + one-time lane-dense padding / transposition
# --------------------------------------------------------------------------------------
def init_raw_params(key, tgt_vocab_size, embedding_size, hidden_size):
    """Random parameters in the PyTorch Decoder's native layout/orientation."""
    ks = jax.random.split(key, 9)

    def w(k, shape, scale=0.1):
        return jax.random.normal(k, shape, jnp.float32) * scale

    H, E, V = hidden_size, embedding_size, tgt_vocab_size
    return {
        "embedding": w(ks[0], (V, E), 0.5),                 # nn.Embedding.weight
        "energy_w": w(ks[1], (1, 3 * H), 0.2),              # nn.Linear(3H, 1).weight
        "energy_b": w(ks[2], (1,), 0.2),                    # nn.Linear(3H, 1).bias
        "w_ih": w(ks[3], (4 * H, 2 * H + E)),               # LSTM weight_ih_l0 [i,f,g,o]
        "w_hh": w(ks[4], (4 * H, H)),                       # LSTM weight_hh_l0
        "b_ih": w(ks[5], (4 * H,)),
        "b_hh": w(ks[6], (4 * H,)),
        "w_fc": w(ks[7], (V, H)),                           # nn.Linear(H, V).weight
        "b_fc": w(ks[8], (V,)),
    }


def prepare_params(raw, weight_dtype=jnp.float32):
    """Pad / transpose parameters into lane-dense kernel layout (done once).

    weight_dtype=jnp.bfloat16 is the production setting (half the weight VMEM/HBM bytes
    and native-MXU matmuls; accumulation stays f32) and is required to fit v7x's 64 MiB
    VMEM at realistic H/V.
    """
    V, E = raw["embedding"].shape
    H = raw["w_hh"].shape[1]
    Ep, Hp = _round_up(E, 128), _round_up(H, 128)
    Dp = _round_up(2 * H + 1, 128)        # +1: constant-one column carrying energy bias
    Vp = _round_up(V, 128)
    G = 4 * Hp

    emb = jnp.zeros((V, Ep), jnp.float32).at[:, :E].set(raw["embedding"])

    # Energy Linear split: the encoder half w_e (with the bias folded into the
    # ones-column row) is applied once per sequence in the wrapper; the hidden half w_h
    # is folded into whh_ext's extra 128-lane column group below.
    w_e = (jnp.zeros((Dp,), jnp.float32)
           .at[:2 * H].set(raw["energy_w"][0, H:])
           .at[2 * H].set(raw["energy_b"][0]))

    whh_ext = jnp.zeros((Hp, G + 128), jnp.float32)
    wih_ctx = jnp.zeros((Dp, G), jnp.float32)
    wih_emb = jnp.zeros((Ep, G), jnp.float32)
    b = jnp.zeros((1, G), jnp.float32)
    bias = raw["b_ih"] + raw["b_hh"]
    for k in range(4):                                        # PyTorch gate order [i,f,g,o]
        w_ih_k = raw["w_ih"][k * H:(k + 1) * H]               # (H, 2H+E)
        wih_ctx = wih_ctx.at[:2 * H, k * Hp:k * Hp + H].set(w_ih_k[:, :2 * H].T)
        wih_emb = wih_emb.at[:E, k * Hp:k * Hp + H].set(w_ih_k[:, 2 * H:].T)
        whh_ext = whh_ext.at[:H, k * Hp:k * Hp + H].set(raw["w_hh"][k * H:(k + 1) * H].T)
        b = b.at[0, k * Hp:k * Hp + H].set(bias[k * H:(k + 1) * H])
    whh_ext = whh_ext.at[:H, G].set(raw["energy_w"][0, :H])   # folded energy w_h

    wfc = jnp.zeros((Hp, Vp), jnp.float32).at[:H, :V].set(raw["w_fc"].T)
    bfc = jnp.zeros((1, Vp), jnp.float32).at[0, :V].set(raw["b_fc"])

    params = {
        "emb": emb, "w_e": w_e,
        # big MXU operands take the (optionally bf16) weight dtype; cell/softmax math
        # and bias adds stay f32 (f32 accumulation via preferred_element_type).
        "whh_ext": whh_ext.astype(weight_dtype),
        "wih_ctx": wih_ctx.astype(weight_dtype),
        "wih_emb": wih_emb.astype(weight_dtype),
        "b": b,
        "wfc": wfc.astype(weight_dtype), "bfc": bfc,
    }
    return params, Dims(E, H, V, Ep, Hp, Dp, Vp)


# --------------------------------------------------------------------------------------
# Pure-JAX reference (mirrors the PyTorch Decoder.forward, unpadded)
# --------------------------------------------------------------------------------------
def decoder_reference(raw, x, encoder_states, hidden, cell):
    H = raw["w_hh"].shape[1]
    S, B, _ = encoder_states.shape
    h, c = hidden[0], cell[0]
    emb = raw["embedding"][x]                                          # (B, E)
    h_rep = jnp.broadcast_to(h[None], (S, B, H))
    cat = jnp.concatenate([h_rep, encoder_states], axis=2)             # (S, B, 3H)
    energy = jax.nn.relu(cat @ raw["energy_w"][0] + raw["energy_b"][0])
    att = jax.nn.softmax(energy, axis=0)[..., None]                    # (S, B, 1)
    ctx = jnp.sum(att * encoder_states, axis=0)                        # (B, 2H)
    rnn_in = jnp.concatenate([ctx, emb], axis=1)
    gates = rnn_in @ raw["w_ih"].T + h @ raw["w_hh"].T + raw["b_ih"] + raw["b_hh"]
    i = jax.nn.sigmoid(gates[:, 0 * H:1 * H])
    f = jax.nn.sigmoid(gates[:, 1 * H:2 * H])
    g = jnp.tanh(gates[:, 2 * H:3 * H])
    o = jax.nn.sigmoid(gates[:, 3 * H:4 * H])
    c2 = f * c + i * g
    h2 = o * jnp.tanh(c2)
    pred = h2 @ raw["w_fc"].T + raw["b_fc"]
    return pred, h2[None], c2[None]


# --------------------------------------------------------------------------------------
if __name__ == "__main__":
    B, S, T = 8, 10, 6
    TGT_VOCAB, EMB, HID = 37, 24, 48     # deliberately not multiples of 128: exercises padding

    key = jax.random.PRNGKey(0)
    kp, kx, ke, kh, kc, kt = jax.random.split(key, 6)
    raw = init_raw_params(kp, TGT_VOCAB, EMB, HID)
    params, dims = prepare_params(raw, weight_dtype=jnp.float32)

    x = jax.random.randint(kx, (B,), 0, TGT_VOCAB, dtype=jnp.int32)
    encoder_states = jax.random.normal(ke, (S, B, 2 * HID), jnp.float32) * 0.5
    hidden = jax.random.normal(kh, (1, B, HID), jnp.float32) * 0.5
    cell = jax.random.normal(kc, (1, B, HID), jnp.float32) * 0.5

    # ---- single Decoder.forward step (module-equivalent), f32 validated ----
    pred, h1, c1 = jax.block_until_ready(
        decoder_forward(params, dims, x, encoder_states, hidden, cell))
    assert pred.shape == (B, TGT_VOCAB)
    assert h1.shape == (1, B, HID) and c1.shape == (1, B, HID)
    assert bool(jnp.all(jnp.isfinite(pred)))

    pred_r, h_r, c_r = decoder_reference(raw, x, encoder_states, hidden, cell)
    assert float(jnp.max(jnp.abs(pred - pred_r))) < 2e-2
    assert float(jnp.max(jnp.abs(h1 - h_r))) < 2e-2
    assert float(jnp.max(jnp.abs(c1 - c_r))) < 2e-2

    # ---- T teacher-forced steps: one grid=(T,) recurrent kernel + deferred vocab proj ----
    tokens = jax.random.randint(kt, (T, B), 0, TGT_VOCAB, dtype=jnp.int32)
    preds_f, hT, cT = jax.block_until_ready(
        decoder_teacher_forced(params, dims, tokens, encoder_states, hidden, cell))
    assert preds_f.shape == (T, B, TGT_VOCAB)
    assert bool(jnp.all(jnp.isfinite(preds_f)))

    # cross-check the fused loop against repeated single-step kernel calls
    h_cur, c_cur = hidden, cell
    preds_loop = []
    for t in range(T):
        p_t, h_cur, c_cur = decoder_forward(params, dims, tokens[t],
                                            encoder_states, h_cur, c_cur)
        preds_loop.append(p_t)
    preds_loop = jnp.stack(preds_loop, axis=0)
    assert float(jnp.max(jnp.abs(preds_f - preds_loop))) < 1e-4
    assert float(jnp.max(jnp.abs(hT - h_cur))) < 1e-4
    assert float(jnp.max(jnp.abs(cT - c_cur))) < 1e-4

    # ---- bf16 MXU-weight path (production default): finite and close to f32 ----
    params_bf16, _ = prepare_params(raw, weight_dtype=jnp.bfloat16)
    preds_b, hT_b, cT_b = jax.block_until_ready(
        decoder_teacher_forced(params_bf16, dims, tokens, encoder_states, hidden, cell))
    assert bool(jnp.all(jnp.isfinite(preds_b)))
    assert float(jnp.max(jnp.abs(preds_b - preds_f))) < 0.25

    print("KERNEL_OK")
</pallas_src>

<mosaic_0001>
module attributes {stable_mosaic.version = 11 : i64} {
  func.func @_vocab_proj_kernel(%arg0: i32, %arg1: memref<8x128xf32, #tpu.memory_space<vmem>>, %arg2: memref<128x128xf32, #tpu.memory_space<vmem>>, %arg3: memref<1x128xf32, #tpu.memory_space<vmem>>, %arg4: memref<8x128xf32, #tpu.memory_space<vmem>>) attributes {dimension_semantics = [#tpu.dimension_semantics<parallel>], iteration_bounds = array<i64: 1>, scalar_prefetch = 0 : i64, scratch_operands = 0 : i64, tpu.core_type = #tpu.core_type<tc>, window_params = [{pipeline_mode = #tpu.pipeline_mode<synchronous>, transform_indices = @transform_0, window_bounds = array<i64: 8, 128>}, {transform_indices = @transform_1, window_bounds = array<i64: 128, 128>}, {transform_indices = @transform_2, window_bounds = array<i64: 1, 128>}, {transform_indices = @transform_3, window_bounds = array<i64: 8, 128>}]} {
    %c0 = arith.constant 0 : index
    %c0_0 = arith.constant 0 : index
    %0 = vector.load %arg1[%c0, %c0_0] : memref<8x128xf32, #tpu.memory_space<vmem>>, vector<8x128xf32>
    %c0_1 = arith.constant 0 : index
    %c0_2 = arith.constant 0 : index
    %1 = vector.load %arg2[%c0_1, %c0_2] : memref<128x128xf32, #tpu.memory_space<vmem>>, vector<128x128xf32>
    %cst = arith.constant dense<0.000000e+00> : vector<8x128xf32>
    %2 = tpu.matmul %0, %1, %cst {dimension_numbers = #tpu.dot_dimension_numbers<[1], [0], [0], [1], [0, 0, 1, 1], [], []>} : vector<8x128xf32>, vector<128x128xf32>, vector<8x128xf32> -> vector<8x128xf32>
    %c0_3 = arith.constant 0 : index
    %c0_4 = arith.constant 0 : index
    %3 = vector.load %arg3[%c0_3, %c0_4] : memref<1x128xf32, #tpu.memory_space<vmem>>, vector<1x128xf32>
    %4 = vector.broadcast %3 : vector<1x128xf32> to vector<8x128xf32>
    %5 = arith.addf %2, %4 : vector<8x128xf32>
    %c0_5 = arith.constant 0 : index
    %c0_6 = arith.constant 0 : index
    %6 = vector.load %arg4[%c0_5, %c0_6] : memref<8x128xf32, #tpu.memory_space<vmem>>, vector<8x128xf32>
    tpu.vector_store %arg4[%c0_5, %c0_6], %5 {strides = array<i32>} : memref<8x128xf32, #tpu.memory_space<vmem>>, vector<8x128xf32>,
    return
  }
  func.func @transform_0(%arg0: i32) -> (i32, i32) {
    %c0_i32 = arith.constant 0 : i32
    %c0_i32_0 = arith.constant 0 : i32
    %c0_i32_1 = arith.constant 0 : i32
    return %c0_i32, %c0_i32_0 : i32, i32
  }
  func.func @transform_1(%arg0: i32) -> (i32, i32) {
    %c0_i32 = arith.constant 0 : i32
    %c0_i32_0 = arith.constant 0 : i32
    return %c0_i32, %arg0 : i32, i32
  }
  func.func @transform_2(%arg0: i32) -> (i32, i32) {
    %c0_i32 = arith.constant 0 : i32
    %c0_i32_0 = arith.constant 0 : i32
    return %c0_i32, %arg0 : i32, i32
  }
  func.func @transform_3(%arg0: i32) -> (i32, i32) {
    %c0_i32 = arith.constant 0 : i32
    %c0_i32_0 = arith.constant 0 : i32
    return %c0_i32, %arg0 : i32, i32
  }
}

module attributes {stable_mosaic.version = 11 : i64} {
  func.func @_decoder_step_kernel(%arg0: memref<8x128xf32, #tpu.memory_space<vmem>>, %arg1: memref<10x8x128xf32, #tpu.memory_space<vmem>>, %arg2: memref<10x8x1xf32, #tpu.memory_space<vmem>>, %arg3: memref<8x128xf32, #tpu.memory_space<vmem>>, %arg4: memref<8x128xf32, #tpu.memory_space<vmem>>, %arg5: memref<128x640xf32, #tpu.memory_space<vmem>>, %arg6: memref<128x512xf32, #tpu.memory_space<vmem>>, %arg7: memref<128x512xf32, #tpu.memory_space<vmem>>, %arg8: memref<1x512xf32, #tpu.memory_space<vmem>>, %arg9: memref<8x128xf32, #tpu.memory_space<vmem>>, %arg10: memref<8x128xf32, #tpu.memory_space<vmem>>) attributes {dimension_semantics = [], scalar_prefetch = 0 : i64, scratch_operands = 0 : i64, tpu.core_type = #tpu.core_type<tc>} {
    %c0 = arith.constant 0 : index
    %c0_0 = arith.constant 0 : index
    %0 = vector.load %arg0[%c0, %c0_0] : memref<8x128xf32, #tpu.memory_space<vmem>>, vector<8x128xf32>
    %c0_1 = arith.constant 0 : index
    %c0_2 = arith.constant 0 : index
    %c0_3 = arith.constant 0 : index
    %1 = vector.load %arg1[%c0_1, %c0_2, %c0_3] : memref<10x8x128xf32, #tpu.memory_space<vmem>>, vector<10x8x128xf32>
    %c0_4 = arith.constant 0 : index
    %c0_5 = arith.constant 0 : index
    %c0_6 = arith.constant 0 : index
    %2 = vector.load %arg2[%c0_4, %c0_5, %c0_6] : memref<10x8x1xf32, #tpu.memory_space<vmem>>, vector<10x8x1xf32>
    %c0_7 = arith.constant 0 : index
    %c0_8 = arith.constant 0 : index
    %3 = vector.load %arg3[%c0_7, %c0_8] : memref<8x128xf32, #tpu.memory_space<vmem>>, vector<8x128xf32>
    %c0_9 = arith.constant 0 : index
    %c0_10 = arith.constant 0 : index
    %4 = vector.load %arg4[%c0_9, %c0_10] : memref<8x128xf32, #tpu.memory_space<vmem>>, vector<8x128xf32>
    %c0_11 = arith.constant 0 : index
    %c0_12 = arith.constant 0 : index
    %5 = vector.load %arg5[%c0_11, %c0_12] : memref<128x640xf32, #tpu.memory_space<vmem>>, vector<128x640xf32>
    %c0_13 = arith.constant 0 : index
    %c0_14 = arith.constant 0 : index
    %6 = vector.load %arg6[%c0_13, %c0_14] : memref<128x512xf32, #tpu.memory_space<vmem>>, vector<128x512xf32>
    %c0_15 = arith.constant 0 : index
    %c0_16 = arith.constant 0 : index
    %7 = vector.load %arg7[%c0_15, %c0_16] : memref<128x512xf32, #tpu.memory_space<vmem>>, vector<128x512xf32>
    %c0_17 = arith.constant 0 : index
    %c0_18 = arith.constant 0 : index
    %8 = vector.load %arg8[%c0_17, %c0_18] : memref<1x512xf32, #tpu.memory_space<vmem>>, vector<1x512xf32>
    %cst = arith.constant dense<0.000000e+00> : vector<8x640xf32>
    %9 = tpu.matmul %3, %5, %cst {dimension_numbers = #tpu.dot_dimension_numbers<[1], [0], [0], [1], [0, 0, 1, 1], [], []>} : vector<8x128xf32>, vector<128x640xf32>, vector<8x640xf32> -> vector<8x640xf32>
    %10 = vector.extract_strided_slice %9 {offsets = [0, 512], sizes = [8, 1], strides = [1, 1]} : vector<8x640xf32> to vector<8x1xf32>
    %11 = vector.shape_cast %10 : vector<8x1xf32> to vector<1x8x1xf32>
    %12 = vector.broadcast %11 : vector<1x8x1xf32> to vector<10x8x1xf32>
    %13 = arith.addf %2, %12 : vector<10x8x1xf32>
    %cst_19 = arith.constant 0.000000e+00 : f32
    %14 = vector.broadcast %cst_19 : f32 to vector<10x8x1xf32>
    %15 = arith.maximumf %13, %14 : vector<10x8x1xf32>
    %cst_20 = arith.constant dense<0xFF800000> : vector<8x1xf32>
    %16 = vector.multi_reduction <maximumf>, %15, %cst_20 [0] : vector<10x8x1xf32> to vector<8x1xf32>
    %17 = vector.shape_cast %16 : vector<8x1xf32> to vector<1x8x1xf32>
    %18 = vector.broadcast %17 : vector<1x8x1xf32> to vector<10x8x1xf32>
    %19 = arith.subf %15, %18 : vector<10x8x1xf32>
    %20 = math.exp %19 : vector<10x8x1xf32>
    %cst_21 = arith.constant dense<0.000000e+00> : vector<8x1xf32>
    %21 = vector.multi_reduction <add>, %20, %cst_21 [0] : vector<10x8x1xf32> to vector<8x1xf32>
    %22 = vector.shape_cast %21 : vector<8x1xf32> to vector<1x8x1xf32>
    %23 = vector.broadcast %22 : vector<1x8x1xf32> to vector<10x8x1xf32>
    %24 = arith.divf %20, %23 : vector<10x8x1xf32>
    %25 = vector.broadcast %24 : vector<10x8x1xf32> to vector<10x8x128xf32>
    %26 = arith.mulf %25, %1 : vector<10x8x128xf32>
    %cst_22 = arith.constant dense<0.000000e+00> : vector<8x128xf32>
    %27 = vector.multi_reduction <add>, %26, %cst_22 [0] : vector<10x8x128xf32> to vector<8x128xf32>
    %cst_23 = arith.constant dense<0.000000e+00> : vector<8x512xf32>
    %28 = tpu.matmul %27, %6, %cst_23 {dimension_numbers = #tpu.dot_dimension_numbers<[1], [0], [0], [1], [0, 0, 1, 1], [], []>} : vector<8x128xf32>, vector<128x512xf32>, vector<8x512xf32> -> vector<8x512xf32>
    %cst_24 = arith.constant dense<0.000000e+00> : vector<8x512xf32>
    %29 = tpu.matmul %0, %7, %cst_24 {dimension_numbers = #tpu.dot_dimension_numbers<[1], [0], [0], [1], [0, 0, 1, 1], [], []>} : vector<8x128xf32>, vector<128x512xf32>, vector<8x512xf32> -> vector<8x512xf32>
    %30 = arith.addf %28, %29 : vector<8x512xf32>
    %31 = vector.extract_strided_slice %9 {offsets = [0, 0], sizes = [8, 512], strides = [1, 1]} : vector<8x640xf32> to vector<8x512xf32>
    %32 = arith.addf %30, %31 : vector<8x512xf32>
    %33 = vector.broadcast %8 : vector<1x512xf32> to vector<8x512xf32>
    %34 = arith.addf %32, %33 : vector<8x512xf32>
    %35 = vector.extract_strided_slice %34 {offsets = [0, 0], sizes = [8, 128], strides = [1, 1]} : vector<8x512xf32> to vector<8x128xf32>
    %36 = arith.negf %35 : vector<8x128xf32>
    %37 = math.exp %36 : vector<8x128xf32>
    %cst_25 = arith.constant 1.000000e+00 : f32
    %38 = vector.broadcast %cst_25 : f32 to vector<8x128xf32>
    %39 = arith.addf %38, %37 : vector<8x128xf32>
    %40 = arith.divf %38, %39 : vector<8x128xf32>
    %41 = vector.extract_strided_slice %34 {offsets = [0, 128], sizes = [8, 128], strides = [1, 1]} : vector<8x512xf32> to vector<8x128xf32>
    %42 = arith.negf %41 : vector<8x128xf32>
    %43 = math.exp %42 : vector<8x128xf32>
    %cst_26 = arith.constant 1.000000e+00 : f32
    %44 = vector.broadcast %cst_26 : f32 to vector<8x128xf32>
    %45 = arith.addf %44, %43 : vector<8x128xf32>
    %46 = arith.divf %44, %45 : vector<8x128xf32>
    %47 = vector.extract_strided_slice %34 {offsets = [0, 256], sizes = [8, 128], strides = [1, 1]} : vector<8x512xf32> to vector<8x128xf32>
    %48 = math.tanh %47 : vector<8x128xf32>
    %49 = vector.extract_strided_slice %34 {offsets = [0, 384], sizes = [8, 128], strides = [1, 1]} : vector<8x512xf32> to vector<8x128xf32>
    %50 = arith.negf %49 : vector<8x128xf32>
    %51 = math.exp %50 : vector<8x128xf32>
    %cst_27 = arith.constant 1.000000e+00 : f32
    %52 = vector.broadcast %cst_27 : f32 to vector<8x128xf32>
    %53 = arith.addf %52, %51 : vector<8x128xf32>
    %54 = arith.divf %52, %53 : vector<8x128xf32>
    %55 = arith.mulf %46, %4 : vector<8x128xf32>
    %56 = arith.mulf %40, %48 : vector<8x128xf32>
    %57 = arith.addf %55, %56 : vector<8x128xf32>
    %58 = math.tanh %57 : vector<8x128xf32>
    %59 = arith.mulf %54, %58 : vector<8x128xf32>
    %c0_28 = arith.constant 0 : index
    %c0_29 = arith.constant 0 : index
    %60 = vector.load %arg9[%c0_28, %c0_29] : memref<8x128xf32, #tpu.memory_space<vmem>>, vector<8x128xf32>
    tpu.vector_store %arg9[%c0_28, %c0_29], %59 {strides = array<i32>} : memref<8x128xf32, #tpu.memory_space<vmem>>, vector<8x128xf32>,
    %c0_30 = arith.constant 0 : index
    %c0_31 = arith.constant 0 : index
    %61 = vector.load %arg10[%c0_30, %c0_31] : memref<8x128xf32, #tpu.memory_space<vmem>>, vector<8x128xf32>
    tpu.vector_store %arg10[%c0_30, %c0_31], %57 {strides = array<i32>} : memref<8x128xf32, #tpu.memory_space<vmem>>, vector<8x128xf32>,
    return
  }
}

</mosaic_0001>

<llo_original>
// kernel: decoder_forward.3
$region0: #{decoder_forward.3}
  #allocation0 [shape = 'u32[]', space=smem, size = 0x4, offset = 0x4, fixed_abs, tag = 'smem constant byte address 0x4 - core index']
  #allocation1 [shape = 'u32[72,128]{1,0:T(1,128)}', space=vmem, size = 0x9000, scoped, tag = 'internal scratch']
  %s0 = inlined_call_operand.vmem [shape: f32[8,128], index: 0, kind: input, shape index: {}]
  %s1 = inlined_call_operand.vmem [shape: f32[128,128], index: 1, kind: input, shape index: {}]
  %s2 = inlined_call_operand.vmem [shape: f32[1,128], index: 2, kind: input, shape index: {}]
  %s3 = inlined_call_operand.hbm [shape: f32[8,128], index: 3, kind: output, shape index: {}]
  %s4 = sld [smem:[#allocation0]]
  $region22: #{decoder_forward.3} parent=0
    _
  %s6 = ssub.s32 1, %s4
  %s7 = scalar_select 0, %s6, %s4
  $region1: #{decoder_forward.3} parent=0
    #allocation2 [shape = 'u8[4096]{0}', space=vmem, size = 0x1000, scoped, tag = 'output window, operand 0, single buffered']
    #allocation3 [shape = 's32[1]{0}', space=sflag, size = 0x4, scoped, tag = 'scoped memory for decoder_forward.3']
    %8 = vsyncpa [#allocation3], 0
    // Predicated region
    $region2: #{decoder_forward.3} parent=1 // pred_check
      _
    $region3: #{decoder_forward.3} parent=1 // pred_check_branch
      %10 = sbr.rel (0) target = $region5
    $region4: #{decoder_forward.3} parent=1 // pred_region
      _
    $region5: #{decoder_forward.3} parent=1 // pred_fallthru
      _
    // Predicated region
    $region6: #{decoder_forward.3} parent=1 // pred_check
      _
    $region7: #{decoder_forward.3} parent=1 // pred_check_branch
      %12 = sbr.rel (0) target = $region9
    $region8: #{decoder_forward.3} parent=1 // pred_region
      _
    $region9: #{decoder_forward.3} parent=1 // pred_fallthru
      _
    // Predicated region
    $region10: #{decoder_forward.3} parent=1 // pred_check
      _
    $region11: #{decoder_forward.3} parent=1 // pred_check_branch
      %14 = sbr.rel (0) target = $region13
    $region12: #{decoder_forward.3} parent=1 // pred_region
      _
    $region13: #{decoder_forward.3} parent=1 // pred_fallthru
      _
    %v15 = vld [vmem:[%s0] sm:$0xff]
    %v16 = vld [vmem:[%s1] sm:$0xff]
    %v17 = vld [vmem:[%s1 + $0x8] sm:$0xff]
    %v18 = vld [vmem:[%s1 + $0x10] sm:$0xff]
    %v19 = vld [vmem:[%s1 + $0x18] sm:$0xff]
    %v20 = vld [vmem:[%s1 + $0x20] sm:$0xff]
    %v21 = vld [vmem:[%s1 + $0x28] sm:$0xff]
    %v22 = vld [vmem:[%s1 + $0x30] sm:$0xff]
    %v23 = vld [vmem:[%s1 + $0x38] sm:$0xff]
    %v24 = vld [vmem:[%s1 + $0x40] sm:$0xff]
    %v25 = vld [vmem:[%s1 + $0x48] sm:$0xff]
    %v26 = vld [vmem:[%s1 + $0x50] sm:$0xff]
    %v27 = vld [vmem:[%s1 + $0x58] sm:$0xff]
    %v28 = vld [vmem:[%s1 + $0x60] sm:$0xff]
    %v29 = vld [vmem:[%s1 + $0x68] sm:$0xff]
    %v30 = vld [vmem:[%s1 + $0x70] sm:$0xff]
    %v31 = vld [vmem:[%s1 + $0x78] sm:$0xff]
    %v32 = vld [vmem:[%s2] sm:$0x1]
    %v34 = vperm.slane %v32, 0
    %36 = vmatpush.msra.mxu0 %v31
    %37 = vmatpush.msra.mxu0 %v30
    %38 = vmatpush.msra.mxu0 %v29
    %39 = vmatpush.msra.mxu0 %v28
    %40 = vmatpush.msra.mxu0 %v27
    %41 = vmatpush.msra.mxu0 %v26
    %42 = vmatpush.msra.mxu0 %v25
    %43 = vmatpush.msra.mxu0 %v24
    %44 = vmatpush.msra.mxu0 %v23
    %45 = vmatpush.msra.mxu0 %v22
    %46 = vmatpush.msra.mxu0 %v21
    %47 = vmatpush.msra.mxu0 %v20
    %48 = vmatpush.msra.mxu0 %v19
    %49 = vmatpush.msra.mxu0 %v18
    %50 = vmatpush.msra.mxu0 %v17
    %51 = vmatpush.msra.mxu0 %v16
    %52 = vmatmul.f32.gmra.mxu0 %v15
    %v53 = vpop.f32.mrf.mxu0
    %v54 = vadd.f32 %v34, %v53
    %55 = vdwg.mxu0
    %56 = vst [vmem:[#allocation2] sm:$0xff] %v54
    // Predicated region
    $region14: #{decoder_forward.3} parent=1 // pred_check
      _
    $region15: #{decoder_forward.3} parent=1 // pred_check_branch
      %58 = sbr.rel (0) target = $region17
    $region16: #{decoder_forward.3} parent=1 // pred_region
      %60 = vsyncadd [#allocation3], 0
      %s62 = sshll.u32 [#allocation2], 4
      %s63 = int_to_ptr.vmem [resolvable:$true] %s62
      %s64 = sshll.u32 %s3, 4
      %s65 = int_to_ptr.hbm [resolvable:$true] %s64
      %67 = dma.vmem_to_hbm [thread:$0]  %s63, 128, %s65, [#allocation3]
    $region17: #{decoder_forward.3} parent=1 // pred_fallthru
      _
    // Predicated region
    $region18: #{decoder_forward.3} parent=1 // pred_check
      _
    $region19: #{decoder_forward.3} parent=1 // pred_check_branch
      %69 = sbr.rel (0) target = $region21
    $region20: #{decoder_forward.3} parent=1 // pred_region
      %71 = dma.done [#allocation3], 128
    $region21: #{decoder_forward.3} parent=1 // pred_fallthru
      _
    %72 = vsyncpa [#allocation3], 1

// kernel: decoder_forward.2
$region0: #{decoder_forward.2}
  #allocation0 [shape = 'u32[]', space=smem, size = 0x4, offset = 0x4, fixed_abs, tag = 'smem constant byte address 0x4 - core index']
  #allocation1 [shape = 'u32[72,128]{1,0:T(1,128)}', space=vmem, size = 0x9000, scoped, tag = 'internal scratch']
  %s0 = inlined_call_operand.vmem [shape: f32[8,128], index: 0, kind: input, shape index: {}]
  %s1 = inlined_call_operand.vmem [shape: f32[10,8,128], index: 1, kind: input, shape index: {}]
  %s2 = inlined_call_operand.vmem [shape: f32[10,8,1], index: 2, kind: input, shape index: {}]
  %s3 = inlined_call_operand.vmem [shape: f32[8,128], index: 3, kind: input, shape index: {}]
  %s4 = inlined_call_operand.vmem [shape: f32[8,128], index: 4, kind: input, shape index: {}]
  %s5 = inlined_call_operand.hbm [shape: f32[128,640], index: 5, kind: input, shape index: {}]
  %s6 = inlined_call_operand.hbm [shape: f32[128,512], index: 6, kind: input, shape index: {}]
  %s7 = inlined_call_operand.hbm [shape: f32[128,512], index: 7, kind: input, shape index: {}]
  %s8 = inlined_call_operand.vmem [shape: f32[1,512], index: 8, kind: input, shape index: {}]
  %s9 = inlined_call_operand.vmem [shape: f32[8,128], index: 9, kind: output, shape index: {0}]
  %s10 = inlined_call_operand.vmem [shape: f32[8,128], index: 10, kind: output, shape index: {1}]
  %11 = xla_tuple %s9, %s10
  %s12 = sld [smem:[#allocation0]]
  $region66: #{decoder_forward.2} parent=0
    _
  %s14 = ssub.s32 1, %s12
  %s15 = scalar_select 0, %s14, %s12
  $region1: #{decoder_forward.2} parent=0
    #allocation2 [shape = 'u8[327680]{0}', space=vmem, size = 0x50000, scoped, tag = 'input window, operand 5, single buffered']
    #allocation3 [shape = 's32[1]{0}', space=sflag, size = 0x4, scoped, tag = 'scoped memory for decoder_forward.2']
    #allocation4 [shape = 'u8[262144]{0}', space=vmem, size = 0x40000, scoped, tag = 'input window, operand 6, single buffered']
    #allocation5 [shape = 's32[1]{0}', space=sflag, size = 0x4, scoped, tag = 'scoped memory for decoder_forward.2']
    #allocation6 [shape = 'u8[262144]{0}', space=vmem, size = 0x40000, scoped, tag = 'input window, operand 7, single buffered']
    %16 = vsyncpa [#allocation3], 0
    %17 = vsyncpa [#allocation5], 0
    // Predicated region
    $region2: #{decoder_forward.2} parent=1 // pred_check
      _
    $region3: #{decoder_forward.2} parent=1 // pred_check_branch
      %19 = sbr.rel (0) target = $region5
    $region4: #{decoder_forward.2} parent=1 // pred_region
      _
    $region5: #{decoder_forward.2} parent=1 // pred_fallthru
      _
    // Predicated region
    $region6: #{decoder_forward.2} parent=1 // pred_check
      _
    $region7: #{decoder_forward.2} parent=1 // pred_check_branch
      %21 = sbr.rel (0) target = $region9
    $region8: #{decoder_forward.2} parent=1 // pred_region
      _
    $region9: #{decoder_forward.2} parent=1 // pred_fallthru
      _
    // Predicated region
    $region10: #{decoder_forward.2} parent=1 // pred_check
      _
    $region11: #{decoder_forward.2} parent=1 // pred_check_branch
      %23 = sbr.rel (0) target = $region13
    $region12: #{decoder_forward.2} parent=1 // pred_region
      _
    $region13: #{decoder_forward.2} parent=1 // pred_fallthru
      _
    // Predicated region
    $region14: #{decoder_forward.2} parent=1 // pred_check
      _
    $region15: #{decoder_forward.2} parent=1 // pred_check_branch
      %25 = sbr.rel (0) target = $region17
    $region16: #{decoder_forward.2} parent=1 // pred_region
      _
    $region17: #{decoder_forward.2} parent=1 // pred_fallthru
      _
    // Predicated region
    $region18: #{decoder_forward.2} parent=1 // pred_check
      _
    $region19: #{decoder_forward.2} parent=1 // pred_check_branch
      %27 = sbr.rel (0) target = $region21
    $region20: #{decoder_forward.2} parent=1 // pred_region
      _
    $region21: #{decoder_forward.2} parent=1 // pred_fallthru
      _
    // Predicated region
    $region22: #{decoder_forward.2} parent=1 // pred_check
      _
    $region23: #{decoder_forward.2} parent=1 // pred_check_branch
      %29 = sbr.rel (0) target = $region25
    $region24: #{decoder_forward.2} parent=1 // pred_region
      %31 = vsyncadd [#allocation3], 0
      %s32 = sshll.u32 %s5, 4
      %s33 = int_to_ptr.hbm [resolvable:$true] %s32
      %s34 = sshll.u32 [#allocation2], 4
      %s35 = int_to_ptr.vmem [resolvable:$true] %s34
      %40 = dma.hbm_to_vmem [thread:$0]  %s33, 10240, %s35, [#allocation3], 640, 640, 40
    $region25: #{decoder_forward.2} parent=1 // pred_fallthru
      _
    // Predicated region
    $region26: #{decoder_forward.2} parent=1 // pred_check
      _
    $region27: #{decoder_forward.2} parent=1 // pred_check_branch
      %42 = sbr.rel (0) target = $region29
    $region28: #{decoder_forward.2} parent=1 // pred_region
      %44 = vsyncadd [#allocation5], 0
      %s45 = sshll.u32 %s6, 4
      %s46 = int_to_ptr.hbm [resolvable:$true] %s45
      %s47 = sshll.u32 [#allocation4], 4
      %s48 = int_to_ptr.vmem [resolvable:$true] %s47
      %53 = dma.hbm_to_vmem [thread:$0]  %s46, 8192, %s48, [#allocation5], 512, 512, 32
    $region29: #{decoder_forward.2} parent=1 // pred_fallthru
      _
    // Predicated region
    $region30: #{decoder_forward.2} parent=1 // pred_check
      _
    $region31: #{decoder_forward.2} parent=1 // pred_check_branch
      %55 = sbr.rel (0) target = $region33
    $region32: #{decoder_forward.2} parent=1 // pred_region
      %57 = vsyncadd [#allocation5], 0
      %s58 = sshll.u32 %s7, 4
      %s59 = int_to_ptr.hbm [resolvable:$true] %s58
      %s60 = sshll.u32 [#allocation6], 4
      %s61 = int_to_ptr.vmem [resolvable:$true] %s60
      %66 = dma.hbm_to_vmem [thread:$0]  %s59, 8192, %s61, [#allocation5], 512, 512, 32
    $region33: #{decoder_forward.2} parent=1 // pred_fallthru
      _
    // Predicated region
    $region34: #{decoder_forward.2} parent=1 // pred_check
      _
    $region35: #{decoder_forward.2} parent=1 // pred_check_branch
      %68 = sbr.rel (0) target = $region37
    $region36: #{decoder_forward.2} parent=1 // pred_region
      _
    $region37: #{decoder_forward.2} parent=1 // pred_fallthru
      _
    // Predicated region
    $region38: #{decoder_forward.2} parent=1 // pred_check
      _
    $region39: #{decoder_forward.2} parent=1 // pred_check_branch
      %70 = sbr.rel (0) target = $region41
    $region40: #{decoder_forward.2} parent=1 // pred_region
      %72 = dma.done [#allocation3], 10240
    $region41: #{decoder_forward.2} parent=1 // pred_fallthru
      _
    // Predicated region
    $region42: #{decoder_forward.2} parent=1 // pred_check
      _
    $region43: #{decoder_forward.2} parent=1 // pred_check_branch
      %74 = sbr.rel (0) target = $region45
    $region44: #{decoder_forward.2} parent=1 // pred_region
      %76 = dma.done [#allocation5], 8192
    $region45: #{decoder_forward.2} parent=1 // pred_fallthru
      _
    // Predicated region
    $region46: #{decoder_forward.2} parent=1 // pred_check
      _
    $region47: #{decoder_forward.2} parent=1 // pred_check_branch
      %78 = sbr.rel (0) target = $region49
    $region48: #{decoder_forward.2} parent=1 // pred_region
      %80 = dma.done [#allocation5], 8192
    $region49: #{decoder_forward.2} parent=1 // pred_fallthru
      _
    %v81 = vld [vmem:[%s0] sm:$0xff]
    %v82 = vld [vmem:[%s1] sm:$0xff]
    %v83 = vld [vmem:[%s1 + $0x8] sm:$0xff]
    %v84 = vld [vmem:[%s1 + $0x10] sm:$0xff]
    %v85 = vld [vmem:[%s1 + $0x18] sm:$0xff]
    %v86 = vld [vmem:[%s1 + $0x20] sm:$0xff]
    %v87 = vld [vmem:[%s1 + $0x28] sm:$0xff]
    %v88 = vld [vmem:[%s1 + $0x30] sm:$0xff]
    %v89 = vld [vmem:[%s1 + $0x38] sm:$0xff]
    %v90 = vld [vmem:[%s1 + $0x40] sm:$0xff]
    %v91 = vld [vmem:[%s1 + $0x48] sm:$0xff]
    %v92 = vld [vmem:[%s2] sm:$0xff]
    %v93 = vld [vmem:[%s2 + $0x8] sm:$0xff]
    %v94 = vld [vmem:[%s2 + $0x10] sm:$0xff]
    %v95 = vld [vmem:[%s2 + $0x18] sm:$0xff]
    %v96 = vld [vmem:[%s2 + $0x20] sm:$0xff]
    %v97 = vld [vmem:[%s2 + $0x28] sm:$0xff]
    %v98 = vld [vmem:[%s2 + $0x30] sm:$0xff]
    %v99 = vld [vmem:[%s2 + $0x38] sm:$0xff]
    %v100 = vld [vmem:[%s2 + $0x40] sm:$0xff]
    %v101 = vld [vmem:[%s2 + $0x48] sm:$0xff]
    %v102 = vld [vmem:[%s3] sm:$0xff]
    %v103 = vld [vmem:[%s4] sm:$0xff]
    %v104 = vld [vmem:[#allocation2] sm:$0xff]
    %v105 = vld [vmem:[#allocation2 + $0x8] sm:$0xff]
    %v106 = vld [vmem:[#allocation2 + $0x10] sm:$0xff]
    %v107 = vld [vmem:[#allocation2 + $0x18] sm:$0xff]
    %v108 = vld [vmem:[#allocation2 + $0x20] sm:$0xff]
    %v109 = vld [vmem:[#allocation2 + $0x28] sm:$0xff]
    %v110 = vld [vmem:[#allocation2 + $0x30] sm:$0xff]
    %v111 = vld [vmem:[#allocation2 + $0x38] sm:$0xff]
    %v112 = vld [vmem:[#allocation2 + $0x40] sm:$0xff]
    %v113 = vld [vmem:[#allocation2 + $0x48] sm:$0xff]
    %v114 = vld [vmem:[#allocation2 + $0x50] sm:$0xff]
    %v115 = vld [vmem:[#allocation2 + $0x58] sm:$0xff]
    %v116 = vld [vmem:[#allocation2 + $0x60] sm:$0xff]
    %v117 = vld [vmem:[#allocation2 + $0x68] sm:$0xff]
    %v118 = vld [vmem:[#allocation2 + $0x70] sm:$0xff]
    %v119 = vld [vmem:[#allocation2 + $0x78] sm:$0xff]
    %v120 = vld [vmem:[#allocation2 + $0x80] sm:$0xff]
    %v121 = vld [vmem:[#allocation2 + $0x88] sm:$0xff]
    %v122 = vld [vmem:[#allocation2 + $0x90] sm:$0xff]
    %v123 = vld [vmem:[#allocation2 + $0x98] sm:$0xff]
    %v124 = vld [vmem:[#allocation2 + $0xa0] sm:$0xff]
    %v125 = vld [vmem:[#allocation2 + $0xa8] sm:$0xff]
    %v126 = vld [vmem:[#allocation2 + $0xb0] sm:$0xff]
    %v127 = vld [vmem:[#allocation2 + $0xb8] sm:$0xff]
    %v128 = vld [vmem:[#allocation2 + $0xc0] sm:$0xff]
    %v129 = vld [vmem:[#allocation2 + $0xc8] sm:$0xff]
    %v130 = vld [vmem:[#allocation2 + $0xd0] sm:$0xff]
    %v131 = vld [vmem:[#allocation2 + $0xd8] sm:$0xff]
    %v132 = vld [vmem:[#allocation2 + $0xe0] sm:$0xff]
    %v133 = vld [vmem:[#allocation2 + $0xe8] sm:$0xff]
    %v134 = vld [vmem:[#allocation2 + $0xf0] sm:$0xff]
    %v135 = vld [vmem:[#allocation2 + $0xf8] sm:$0xff]
    %v136 = vld [vmem:[#allocation2 + $0x100] sm:$0xff]
    %v137 = vld [vmem:[#allocation2 + $0x108] sm:$0xff]
    %v138 = vld [vmem:[#allocation2 + $0x110] sm:$0xff]
    %v139 = vld [vmem:[#allocation2 + $0x118] sm:$0xff]
    %v140 = vld [vmem:[#allocation2 + $0x120] sm:$0xff]
    %v141 = vld [vmem:[#allocation2 + $0x128] sm:$0xff]
    %v142 = vld [vmem:[#allocation2 + $0x130] sm:$0xff]
    %v143 = vld [vmem:[#allocation2 + $0x138] sm:$0xff]
    %v144 = vld [vmem:[#allocation2 + $0x140] sm:$0xff]
    %v145 = vld [vmem:[#allocation2 + $0x148] sm:$0xff]
    %v146 = vld [vmem:[#allocation2 + $0x150] sm:$0xff]
    %v147 = vld [vmem:[#allocation2 + $0x158] sm:$0xff]
    %v148 = vld [vmem:[#allocation2 + $0x160] sm:$0xff]
    %v149 = vld [vmem:[#allocation2 + $0x168] sm:$0xff]
    %v150 = vld [vmem:[#allocation2 + $0x170] sm:$0xff]
    %v151 = vld [vmem:[#allocation2 + $0x178] sm:$0xff]
    %v152 = vld [vmem:[#allocation2 + $0x180] sm:$0xff]
    %v153 = vld [vmem:[#allocation2 + $0x188] sm:$0xff]
    %v154 = vld [vmem:[#allocation2 + $0x190] sm:$0xff]
    %v155 = vld [vmem:[#allocation2 + $0x198] sm:$0xff]
    %v156 = vld [vmem:[#allocation2 + $0x1a0] sm:$0xff]
    %v157 = vld [vmem:[#allocation2 + $0x1a8] sm:$0xff]
    %v158 = vld [vmem:[#allocation2 + $0x1b0] sm:$0xff]
    %v159 = vld [vmem:[#allocation2 + $0x1b8] sm:$0xff]
    %v160 = vld [vmem:[#allocation2 + $0x1c0] sm:$0xff]
    %v161 = vld [vmem:[#allocation2 + $0x1c8] sm:$0xff]
    %v162 = vld [vmem:[#allocation2 + $0x1d0] sm:$0xff]
    %v163 = vld [vmem:[#allocation2 + $0x1d8] sm:$0xff]
    %v164 = vld [vmem:[#allocation2 + $0x1e0] sm:$0xff]
    %v165 = vld [vmem:[#allocation2 + $0x1e8] sm:$0xff]
    %v166 = vld [vmem:[#allocation2 + $0x1f0] sm:$0xff]
    %v167 = vld [vmem:[#allocation2 + $0x1f8] sm:$0xff]
    %v168 = vld [vmem:[#allocation2 + $0x200] sm:$0xff]
    %v169 = vld [vmem:[#allocation2 + $0x208] sm:$0xff]
    %v170 = vld [vmem:[#allocation2 + $0x210] sm:$0xff]
    %v171 = vld [vmem:[#allocation2 + $0x218] sm:$0xff]
    %v172 = vld [vmem:[#allocation2 + $0x220] sm:$0xff]
    %v173 = vld [vmem:[#allocation2 + $0x228] sm:$0xff]
    %v174 = vld [vmem:[#allocation2 + $0x230] sm:$0xff]
    %v175 = vld [vmem:[#allocation2 + $0x238] sm:$0xff]
    %v176 = vld [vmem:[#allocation2 + $0x240] sm:$0xff]
    %v177 = vld [vmem:[#allocation2 + $0x248] sm:$0xff]
    %v178 = vld [vmem:[#allocation2 + $0x250] sm:$0xff]
    %v179 = vld [vmem:[#allocation2 + $0x258] sm:$0xff]
    %v180 = vld [vmem:[#allocation2 + $0x260] sm:$0xff]
    %v181 = vld [vmem:[#allocation2 + $0x268] sm:$0xff]
    %v182 = vld [vmem:[#allocation2 + $0x270] sm:$0xff]
    %v183 = vld [vmem:[#allocation2 + $0x278] sm:$0xff]
    %v184 = vld [vmem:[#allocation4] sm:$0xff]
    %v185 = vld [vmem:[#allocation4 + $0x8] sm:$0xff]
    %v186 = vld [vmem:[#allocation4 + $0x10] sm:$0xff]
    %v187 = vld [vmem:[#allocation4 + $0x18] sm:$0xff]
    %v188 = vld [vmem:[#allocation4 + $0x20] sm:$0xff]
    %v189 = vld [vmem:[#allocation4 + $0x28] sm:$0xff]
    %v190 = vld [vmem:[#allocation4 + $0x30] sm:$0xff]
    %v191 = vld [vmem:[#allocation4 + $0x38] sm:$0xff]
    %v192 = vld [vmem:[#allocation4 + $0x40] sm:$0xff]
    %v193 = vld [vmem:[#allocation4 + $0x48] sm:$0xff]
    %v194 = vld [vmem:[#allocation4 + $0x50] sm:$0xff]
    %v195 = vld [vmem:[#allocation4 + $0x58] sm:$0xff]
    %v196 = vld [vmem:[#allocation4 + $0x60] sm:$0xff]
    %v197 = vld [vmem:[#allocation4 + $0x68] sm:$0xff]
    %v198 = vld [vmem:[#allocation4 + $0x70] sm:$0xff]
    %v199 = vld [vmem:[#allocation4 + $0x78] sm:$0xff]
    %v200 = vld [vmem:[#allocation4 + $0x80] sm:$0xff]
    %v201 = vld [vmem:[#allocation4 + $0x88] sm:$0xff]
    %v202 = vld [vmem:[#allocation4 + $0x90] sm:$0xff]
    %v203 = vld [vmem:[#allocation4 + $0x98] sm:$0xff]
    %v204 = vld [vmem:[#allocation4 + $0xa0] sm:$0xff]
    %v205 = vld [vmem:[#allocation4 + $0xa8] sm:$0xff]
    %v206 = vld [vmem:[#allocation4 + $0xb0] sm:$0xff]
    %v207 = vld [vmem:[#allocation4 + $0xb8] sm:$0xff]
    %v208 = vld [vmem:[#allocation4 + $0xc0] sm:$0xff]
    %v209 = vld [vmem:[#allocation4 + $0xc8] sm:$0xff]
    %v210 = vld [vmem:[#allocation4 + $0xd0] sm:$0xff]
    %v211 = vld [vmem:[#allocation4 + $0xd8] sm:$0xff]
    %v212 = vld [vmem:[#allocation4 + $0xe0] sm:$0xff]
    %v213 = vld [vmem:[#allocation4 + $0xe8] sm:$0xff]
    %v214 = vld [vmem:[#allocation4 + $0xf0] sm:$0xff]
    %v215 = vld [vmem:[#allocation4 + $0xf8] sm:$0xff]
    %v216 = vld [vmem:[#allocation4 + $0x100] sm:$0xff]
    %v217 = vld [vmem:[#allocation4 + $0x108] sm:$0xff]
    %v218 = vld [vmem:[#allocation4 + $0x110] sm:$0xff]
    %v219 = vld [vmem:[#allocation4 + $0x118] sm:$0xff]
    %v220 = vld [vmem:[#allocation4 + $0x120] sm:$0xff]
    %v221 = vld [vmem:[#allocation4 + $0x128] sm:$0xff]
    %v222 = vld [vmem:[#allocation4 + $0x130] sm:$0xff]
    %v223 = vld [vmem:[#allocation4 + $0x138] sm:$0xff]
    %v224 = vld [vmem:[#allocation4 + $0x140] sm:$0xff]
    %v225 = vld [vmem:[#allocation4 + $0x148] sm:$0xff]
    %v226 = vld [vmem:[#allocation4 + $0x150] sm:$0xff]
    %v227 = vld [vmem:[#allocation4 + $0x158] sm:$0xff]
    %v228 = vld [vmem:[#allocation4 + $0x160] sm:$0xff]
    %v229 = vld [vmem:[#allocation4 + $0x168] sm:$0xff]
    %v230 = vld [vmem:[#allocation4 + $0x170] sm:$0xff]
    %v231 = vld [vmem:[#allocation4 + $0x178] sm:$0xff]
    %v232 = vld [vmem:[#allocation4 + $0x180] sm:$0xff]
    %v233 = vld [vmem:[#allocation4 + $0x188] sm:$0xff]
    %v234 = vld [vmem:[#allocation4 + $0x190] sm:$0xff]
    %v235 = vld [vmem:[#allocation4 + $0x198] sm:$0xff]
    %v236 = vld [vmem:[#allocation4 + $0x1a0] sm:$0xff]
    %v237 = vld [vmem:[#allocation4 + $0x1a8] sm:$0xff]
    %v238 = vld [vmem:[#allocation4 + $0x1b0] sm:$0xff]
    %v239 = vld [vmem:[#allocation4 + $0x1b8] sm:$0xff]
    %v240 = vld [vmem:[#allocation4 + $0x1c0] sm:$0xff]
    %v241 = vld [vmem:[#allocation4 + $0x1c8] sm:$0xff]
    %v242 = vld [vmem:[#allocation4 + $0x1d0] sm:$0xff]
    %v243 = vld [vmem:[#allocation4 + $0x1d8] sm:$0xff]
    %v244 = vld [vmem:[#allocation4 + $0x1e0] sm:$0xff]
    %v245 = vld [vmem:[#allocation4 + $0x1e8] sm:$0xff]
    %v246 = vld [vmem:[#allocation4 + $0x1f0] sm:$0xff]
    %v247 = vld [vmem:[#allocation4 + $0x1f8] sm:$0xff]
    %v248 = vld [vmem:[#allocation6] sm:$0xff]
    %v249 = vld [vmem:[#allocation6 + $0x8] sm:$0xff]
    %v250 = vld [vmem:[#allocation6 + $0x10] sm:$0xff]
    %v251 = vld [vmem:[#allocation6 + $0x18] sm:$0xff]
    %v252 = vld [vmem:[#allocation6 + $0x20] sm:$0xff]
    %v253 = vld [vmem:[#allocation6 + $0x28] sm:$0xff]
    %v254 = vld [vmem:[#allocation6 + $0x30] sm:$0xff]
    %v255 = vld [vmem:[#allocation6 + $0x38] sm:$0xff]
    %v256 = vld [vmem:[#allocation6 + $0x40] sm:$0xff]
    %v257 = vld [vmem:[#allocation6 + $0x48] sm:$0xff]
    %v258 = vld [vmem:[#allocation6 + $0x50] sm:$0xff]
    %v259 = vld [vmem:[#allocation6 + $0x58] sm:$0xff]
    %v260 = vld [vmem:[#allocation6 + $0x60] sm:$0xff]
    %v261 = vld [vmem:[#allocation6 + $0x68] sm:$0xff]
    %v262 = vld [vmem:[#allocation6 + $0x70] sm:$0xff]
    %v263 = vld [vmem:[#allocation6 + $0x78] sm:$0xff]
    %v264 = vld [vmem:[#allocation6 + $0x80] sm:$0xff]
    %v265 = vld [vmem:[#allocation6 + $0x88] sm:$0xff]
    %v266 = vld [vmem:[#allocation6 + $0x90] sm:$0xff]
    %v267 = vld [vmem:[#allocation6 + $0x98] sm:$0xff]
    %v268 = vld [vmem:[#allocation6 + $0xa0] sm:$0xff]
    %v269 = vld [vmem:[#allocation6 + $0xa8] sm:$0xff]
    %v270 = vld [vmem:[#allocation6 + $0xb0] sm:$0xff]
    %v271 = vld [vmem:[#allocation6 + $0xb8] sm:$0xff]
    %v272 = vld [vmem:[#allocation6 + $0xc0] sm:$0xff]
    %v273 = vld [vmem:[#allocation6 + $0xc8] sm:$0xff]
    %v274 = vld [vmem:[#allocation6 + $0xd0] sm:$0xff]
    %v275 = vld [vmem:[#allocation6 + $0xd8] sm:$0xff]
    %v276 = vld [vmem:[#allocation6 + $0xe0] sm:$0xff]
    %v277 = vld [vmem:[#allocation6 + $0xe8] sm:$0xff]
    %v278 = vld [vmem:[#allocation6 + $0xf0] sm:$0xff]
    %v279 = vld [vmem:[#allocation6 + $0xf8] sm:$0xff]
    %v280 = vld [vmem:[#allocation6 + $0x100] sm:$0xff]
    %v281 = vld [vmem:[#allocation6 + $0x108] sm:$0xff]
    %v282 = vld [vmem:[#allocation6 + $0x110] sm:$0xff]
    %v283 = vld [vmem:[#allocation6 + $0x118] sm:$0xff]
    %v284 = vld [vmem:[#allocation6 + $0x120] sm:$0xff]
    %v285 = vld [vmem:[#allocation6 + $0x128] sm:$0xff]
    %v286 = vld [vmem:[#allocation6 + $0x130] sm:$0xff]
    %v287 = vld [vmem:[#allocation6 + $0x138] sm:$0xff]
    %v288 = vld [vmem:[#allocation6 + $0x140] sm:$0xff]
    %v289 = vld [vmem:[#allocation6 + $0x148] sm:$0xff]
    %v290 = vld [vmem:[#allocation6 + $0x150] sm:$0xff]
    %v291 = vld [vmem:[#allocation6 + $0x158] sm:$0xff]
    %v292 = vld [vmem:[#allocation6 + $0x160] sm:$0xff]
    %v293 = vld [vmem:[#allocation6 + $0x168] sm:$0xff]
    %v294 = vld [vmem:[#allocation6 + $0x170] sm:$0xff]
    %v295 = vld [vmem:[#allocation6 + $0x178] sm:$0xff]
    %v296 = vld [vmem:[#allocation6 + $0x180] sm:$0xff]
    %v297 = vld [vmem:[#allocation6 + $0x188] sm:$0xff]
    %v298 = vld [vmem:[#allocation6 + $0x190] sm:$0xff]
    %v299 = vld [vmem:[#allocation6 + $0x198] sm:$0xff]
    %v300 = vld [vmem:[#allocation6 + $0x1a0] sm:$0xff]
    %v301 = vld [vmem:[#allocation6 + $0x1a8] sm:$0xff]
    %v302 = vld [vmem:[#allocation6 + $0x1b0] sm:$0xff]
    %v303 = vld [vmem:[#allocation6 + $0x1b8] sm:$0xff]
    %v304 = vld [vmem:[#allocation6 + $0x1c0] sm:$0xff]
    %v305 = vld [vmem:[#allocation6 + $0x1c8] sm:$0xff]
    %v306 = vld [vmem:[#allocation6 + $0x1d0] sm:$0xff]
    %v307 = vld [vmem:[#allocation6 + $0x1d8] sm:$0xff]
    %v308 = vld [vmem:[#allocation6 + $0x1e0] sm:$0xff]
    %v309 = vld [vmem:[#allocation6 + $0x1e8] sm:$0xff]
    %v310 = vld [vmem:[#allocation6 + $0x1f0] sm:$0xff]
    %v311 = vld [vmem:[#allocation6 + $0x1f8] sm:$0xff]
    %v312 = vld [vmem:[%s8] sm:$0xf]
    %313 = vmatpush.msra.mxu0 %v179
    %314 = vmatpush.msra.mxu0 %v174
    %315 = vmatpush.msra.mxu0 %v169
    %316 = vmatpush.msra.mxu0 %v164
    %317 = vmatpush.msra.mxu0 %v159
    %318 = vmatpush.msra.mxu0 %v154
    %319 = vmatpush.msra.mxu0 %v149
    %320 = vmatpush.msra.mxu0 %v144
    %321 = vmatpush.msra.mxu0 %v139
    %322 = vmatpush.msra.mxu0 %v134
    %323 = vmatpush.msra.mxu0 %v129
    %324 = vmatpush.msra.mxu0 %v124
    %325 = vmatpush.msra.mxu0 %v119
    %326 = vmatpush.msra.mxu0 %v114
    %327 = vmatpush.msra.mxu0 %v109
    %328 = vmatpush.msra.mxu0 %v104
    %329 = vmatmul.f32.gmra.mxu0 %v102
    %v330 = vpop.f32.mrf.mxu0
    %v331 = vadd.f32 0.0, %v330
    %332 = vdwg.mxu0
    %333 = vmatpush.msra.mxu0 %v180
    %334 = vmatpush.msra.mxu0 %v175
    %335 = vmatpush.msra.mxu0 %v170
    %336 = vmatpush.msra.mxu0 %v165
    %337 = vmatpush.msra.mxu0 %v160
    %338 = vmatpush.msra.mxu0 %v155
    %339 = vmatpush.msra.mxu0 %v150
    %340 = vmatpush.msra.mxu0 %v145
    %341 = vmatpush.msra.mxu0 %v140
    %342 = vmatpush.msra.mxu0 %v135
    %343 = vmatpush.msra.mxu0 %v130
    %344 = vmatpush.msra.mxu0 %v125
    %345 = vmatpush.msra.mxu0 %v120
    %346 = vmatpush.msra.mxu0 %v115
    %347 = vmatpush.msra.mxu0 %v110
    %348 = vmatpush.msra.mxu0 %v105
    %349 = vmatmul.f32.gmra.mxu0 %v102
    %v350 = vpop.f32.mrf.mxu0
    %v351 = vadd.f32 0.0, %v350
    %352 = vdwg.mxu0
    %353 = vmatpush.msra.mxu0 %v181
    %354 = vmatpush.msra.mxu0 %v176
    %355 = vmatpush.msra.mxu0 %v171
    %356 = vmatpush.msra.mxu0 %v166
    %357 = vmatpush.msra.mxu0 %v161
    %358 = vmatpush.msra.mxu0 %v156
    %359 = vmatpush.msra.mxu0 %v151
    %360 = vmatpush.msra.mxu0 %v146
    %361 = vmatpush.msra.mxu0 %v141
    %362 = vmatpush.msra.mxu0 %v136
    %363 = vmatpush.msra.mxu0 %v131
    %364 = vmatpush.msra.mxu0 %v126
    %365 = vmatpush.msra.mxu0 %v121
    %366 = vmatpush.msra.mxu0 %v116
    %367 = vmatpush.msra.mxu0 %v111
    %368 = vmatpush.msra.mxu0 %v106
    %369 = vmatmul.f32.gmra.mxu0 %v102
    %v370 = vpop.f32.mrf.mxu0
    %v371 = vadd.f32 0.0, %v370
    %372 = vdwg.mxu0
    %373 = vmatpush.msra.mxu0 %v182
    %374 = vmatpush.msra.mxu0 %v177
    %375 = vmatpush.msra.mxu0 %v172
    %376 = vmatpush.msra.mxu0 %v167
    %377 = vmatpush.msra.mxu0 %v162
    %378 = vmatpush.msra.mxu0 %v157
    %379 = vmatpush.msra.mxu0 %v152
    %380 = vmatpush.msra.mxu0 %v147
    %381 = vmatpush.msra.mxu0 %v142
    %382 = vmatpush.msra.mxu0 %v137
    %383 = vmatpush.msra.mxu0 %v132
    %384 = vmatpush.msra.mxu0 %v127
    %385 = vmatpush.msra.mxu0 %v122
    %386 = vmatpush.msra.mxu0 %v117
    %387 = vmatpush.msra.mxu0 %v112
    %388 = vmatpush.msra.mxu0 %v107
    %389 = vmatmul.f32.gmra.mxu0 %v102
    %v390 = vpop.f32.mrf.mxu0
    %v391 = vadd.f32 0.0, %v390
    %392 = vdwg.mxu0
    %393 = vmatpush.msra.mxu0 %v183
    %394 = vmatpush.msra.mxu0 %v178
    %395 = vmatpush.msra.mxu0 %v173
    %396 = vmatpush.msra.mxu0 %v168
    %397 = vmatpush.msra.mxu0 %v163
    %398 = vmatpush.msra.mxu0 %v158
    %399 = vmatpush.msra.mxu0 %v153
    %400 = vmatpush.msra.mxu0 %v148
    %401 = vmatpush.msra.mxu0 %v143
    %402 = vmatpush.msra.mxu0 %v138
    %403 = vmatpush.msra.mxu0 %v133
    %404 = vmatpush.msra.mxu0 %v128
    %405 = vmatpush.msra.mxu0 %v123
    %406 = vmatpush.msra.mxu0 %v118
    %407 = vmatpush.msra.mxu0 %v113
    %408 = vmatpush.msra.mxu0 %v108
    %409 = vmatmul.f32.gmra.mxu0 %v102
    %v410 = vpop.f32.mrf.mxu0
    %v411 = vadd.f32 0.0, %v410
    %412 = vdwg.mxu0
    %v413 = vadd.f32 %v92, %v411
    %v414 = vadd.f32 %v93, %v411
    %v415 = vadd.f32 %v94, %v411
    %v416 = vadd.f32 %v95, %v411
    %v417 = vadd.f32 %v96, %v411
    %v418 = vadd.f32 %v97, %v411
    %v419 = vadd.f32 %v98, %v411
    %v420 = vadd.f32 %v99, %v411
    %v421 = vadd.f32 %v100, %v411
    %v422 = vadd.f32 %v101, %v411
    %v423 = vmax.f32 %v413, 0.0
    %v424 = vmax.f32 %v414, 0.0
    %v425 = vmax.f32 %v415, 0.0
    %v426 = vmax.f32 %v416, 0.0
    %v427 = vmax.f32 %v417, 0.0
    %v428 = vmax.f32 %v418, 0.0
    %v429 = vmax.f32 %v419, 0.0
    %v430 = vmax.f32 %v420, 0.0
    %v431 = vmax.f32 %v421, 0.0
    %v432 = vmax.f32 %v422, 0.0
    %vm433 = vcmask 7168
    %v434 = vsel %vm433, %v423, -inf
    %v435 = vsel %vm433, %v424, -inf
    %v436 = vsel %vm433, %v425, -inf
    %v437 = vsel %vm433, %v426, -inf
    %v438 = vsel %vm433, %v427, -inf
    %v439 = vmax.f32 %v434, %v438
    %v440 = vsel %vm433, %v428, -inf
    %v441 = vmax.f32 %v435, %v440
    %v442 = vsel %vm433, %v429, -inf
    %v443 = vmax.f32 %v436, %v442
    %v444 = vsel %vm433, %v430, -inf
    %v445 = vmax.f32 %v437, %v444
    %v446 = vsel %vm433, %v431, -inf
    %v447 = vmax.f32 %v439, %v446
    %v448 = vsel %vm433, %v432, -inf
    %v449 = vmax.f32 %v441, %v448
    %v450 = vmax.f32 %v447, %v449
    %v451 = vmax.f32 %v443, %v445
    %v452 = vmax.f32 %v450, %v451
    %v453 = vsub.f32 %v423, %v452
    %v454 = vsub.f32 %v424, %v452
    %v455 = vsub.f32 %v425, %v452
    %v456 = vsub.f32 %v426, %v452
    %v457 = vsub.f32 %v427, %v452
    %v458 = vsub.f32 %v428, %v452
    %v459 = vsub.f32 %v429, %v452
    %v460 = vsub.f32 %v430, %v452
    %v461 = vsub.f32 %v431, %v452
    %v462 = vsub.f32 %v432, %v452
    %v463 = vmul.f32 %v453, 1.442695
    %v464 = vpow.pop %v463
    %v465 = vmul.f32 %v454, 1.442695
    %v466 = vpow.pop %v465
    %v467 = vmul.f32 %v455, 1.442695
    %v468 = vpow.pop %v467
    %v469 = vmul.f32 %v456, 1.442695
    %v470 = vpow.pop %v469
    %v471 = vmul.f32 %v457, 1.442695
    %v472 = vpow.pop %v471
    %v473 = vmul.f32 %v458, 1.442695
    %v474 = vpow.pop %v473
    %v475 = vmul.f32 %v459, 1.442695
    %v476 = vpow.pop %v475
    %v477 = vmul.f32 %v460, 1.442695
    %v478 = vpow.pop %v477
    %v479 = vmul.f32 %v461, 1.442695
    %v480 = vpow.pop %v479
    %v481 = vmul.f32 %v462, 1.442695
    %v482 = vpow.pop %v481
    %v483 = vsel %vm433, %v464, 0.0
    %v484 = vsel %vm433, %v466, 0.0
    %v485 = vadd.f32 %v483, %v484
    %v486 = vsel %vm433, %v468, 0.0
    %v487 = vadd.f32 %v485, %v486
    %v488 = vsel %vm433, %v470, 0.0
    %v489 = vadd.f32 %v487, %v488
    %v490 = vsel %vm433, %v472, 0.0
    %v491 = vadd.f32 %v489, %v490
    %v492 = vsel %vm433, %v474, 0.0
    %v493 = vadd.f32 %v491, %v492
    %v494 = vsel %vm433, %v476, 0.0
    %v495 = vadd.f32 %v493, %v494
    %v496 = vsel %vm433, %v478, 0.0
    %v497 = vadd.f32 %v495, %v496
    %v498 = vsel %vm433, %v480, 0.0
    %v499 = vadd.f32 %v497, %v498
    %v500 = vsel %vm433, %v482, 0.0
    %v501 = vadd.f32 %v499, %v500
    %v502 = vrcp.pop %v501
    %v503 = vmul.f32 %v501, %v502
    %v504 = vsub.f32 1.0, %v503
    %v505 = vmul.f32 %v502, %v504
    %v506 = vadd.f32 %v502, %v505
    %vm507 = vweird.f32 %v501
    %vm508 = vweird.f32 %v502
    %vm509 = vmor %vm507, %vm508
    %v510 = vsel %vm509, %v502, %v506
    %v511 = vand.u32 2147483647, %v501
    %vm512 = vcmp.eq.f32.partialorder %v511, 8.507059e+37
    %v513 = vand.u32 %v501, 2147483648
    %v514 = vor.u32 1.1754944e-38, %v513
    %v515 = vsel %vm512, %v514, %v510
    %v516 = vmul.f32 %v464, %v515
    %v517 = vmul.f32 %v466, %v515
    %v518 = vmul.f32 %v468, %v515
    %v519 = vmul.f32 %v470, %v515
    %v520 = vmul.f32 %v472, %v515
    %v521 = vmul.f32 %v474, %v515
    %v522 = vmul.f32 %v476, %v515
    %v523 = vmul.f32 %v478, %v515
    %v524 = vmul.f32 %v480, %v515
    %v525 = vmul.f32 %v482, %v515
    %527 = vset.pattern.permute.xlu0 0
    %528 = vperm.xlu0 %527, %v516
    %v529 = vpop.permute.xlu0 %528
    %532 = vset.pattern.permute.xlu0 0
    %533 = vperm.xlu0 %532, %v517
    %v534 = vpop.permute.xlu0 %533
    %537 = vset.pattern.permute.xlu0 0
    %538 = vperm.xlu0 %537, %v518
    %v539 = vpop.permute.xlu0 %538
    %542 = vset.pattern.permute.xlu0 0
    %543 = vperm.xlu0 %542, %v519
    %v544 = vpop.permute.xlu0 %543
    %547 = vset.pattern.permute.xlu0 0
    %548 = vperm.xlu0 %547, %v520
    %v549 = vpop.permute.xlu0 %548
    %552 = vset.pattern.permute.xlu0 0
    %553 = vperm.xlu0 %552, %v521
    %v554 = vpop.permute.xlu0 %553
    %557 = vset.pattern.permute.xlu0 0
    %558 = vperm.xlu0 %557, %v522
    %v559 = vpop.permute.xlu0 %558
    %562 = vset.pattern.permute.xlu0 0
    %563 = vperm.xlu0 %562, %v523
    %v564 = vpop.permute.xlu0 %563
    %567 = vset.pattern.permute.xlu0 0
    %568 = vperm.xlu0 %567, %v524
    %v569 = vpop.permute.xlu0 %568
    %572 = vset.pattern.permute.xlu0 0
    %573 = vperm.xlu0 %572, %v525
    %v574 = vpop.permute.xlu0 %573
    %v576 = vmul.f32 %v529, %v82
    %v577 = vmul.f32 %v534, %v83
    %v578 = vmul.f32 %v539, %v84
    %v579 = vmul.f32 %v544, %v85
    %v580 = vmul.f32 %v549, %v86
    %v581 = vmul.f32 %v554, %v87
    %v582 = vmul.f32 %v559, %v88
    %v583 = vmul.f32 %v564, %v89
    %v584 = vmul.f32 %v569, %v90
    %v585 = vmul.f32 %v574, %v91
    %v586 = vadd.f32 %v576, %v577
    %v587 = vadd.f32 %v586, %v578
    %v588 = vadd.f32 %v587, %v579
    %v589 = vadd.f32 %v588, %v580
    %v590 = vadd.f32 %v589, %v581
    %v591 = vadd.f32 %v590, %v582
    %v592 = vadd.f32 %v591, %v583
    %v593 = vadd.f32 %v592, %v584
    %v594 = vadd.f32 %v593, %v585
    %595 = vmatpush.msra.mxu0 %v308
    %596 = vmatpush.msra.mxu0 %v304
    %597 = vmatpush.msra.mxu0 %v300
    %598 = vmatpush.msra.mxu0 %v296
    %599 = vmatpush.msra.mxu0 %v292
    %600 = vmatpush.msra.mxu0 %v288
    %601 = vmatpush.msra.mxu0 %v284
    %602 = vmatpush.msra.mxu0 %v280
    %603 = vmatpush.msra.mxu0 %v276
    %604 = vmatpush.msra.mxu0 %v272
    %605 = vmatpush.msra.mxu0 %v268
    %606 = vmatpush.msra.mxu0 %v264
    %607 = vmatpush.msra.mxu0 %v260
    %608 = vmatpush.msra.mxu0 %v256
    %609 = vmatpush.msra.mxu0 %v252
    %610 = vmatpush.msra.mxu0 %v248
    %611 = vmatmul.f32.gmra.mxu0 %v81
    %v612 = vpop.f32.mrf.mxu0
    %v613 = vadd.f32 0.0, %v612
    %614 = vdwg.mxu0
    %615 = vmatpush.msra.mxu0 %v309
    %616 = vmatpush.msra.mxu0 %v305
    %617 = vmatpush.msra.mxu0 %v301
    %618 = vmatpush.msra.mxu0 %v297
    %619 = vmatpush.msra.mxu0 %v293
    %620 = vmatpush.msra.mxu0 %v289
    %621 = vmatpush.msra.mxu0 %v285
    %622 = vmatpush.msra.mxu0 %v281
    %623 = vmatpush.msra.mxu0 %v277
    %624 = vmatpush.msra.mxu0 %v273
    %625 = vmatpush.msra.mxu0 %v269
    %626 = vmatpush.msra.mxu0 %v265
    %627 = vmatpush.msra.mxu0 %v261
    %628 = vmatpush.msra.mxu0 %v257
    %629 = vmatpush.msra.mxu0 %v253
    %630 = vmatpush.msra.mxu0 %v249
    %631 = vmatmul.f32.gmra.mxu0 %v81
    %v632 = vpop.f32.mrf.mxu0
    %v633 = vadd.f32 0.0, %v632
    %634 = vdwg.mxu0
    %635 = vmatpush.msra.mxu0 %v310
    %636 = vmatpush.msra.mxu0 %v306
    %637 = vmatpush.msra.mxu0 %v302
    %638 = vmatpush.msra.mxu0 %v298
    %639 = vmatpush.msra.mxu0 %v294
    %640 = vmatpush.msra.mxu0 %v290
    %641 = vmatpush.msra.mxu0 %v286
    %642 = vmatpush.msra.mxu0 %v282
    %643 = vmatpush.msra.mxu0 %v278
    %644 = vmatpush.msra.mxu0 %v274
    %645 = vmatpush.msra.mxu0 %v270
    %646 = vmatpush.msra.mxu0 %v266
    %647 = vmatpush.msra.mxu0 %v262
    %648 = vmatpush.msra.mxu0 %v258
    %649 = vmatpush.msra.mxu0 %v254
    %650 = vmatpush.msra.mxu0 %v250
    %651 = vmatmul.f32.gmra.mxu0 %v81
    %v652 = vpop.f32.mrf.mxu0
    %v653 = vadd.f32 0.0, %v652
    %654 = vdwg.mxu0
    %655 = vmatpush.msra.mxu0 %v311
    %656 = vmatpush.msra.mxu0 %v307
    %657 = vmatpush.msra.mxu0 %v303
    %658 = vmatpush.msra.mxu0 %v299
    %659 = vmatpush.msra.mxu0 %v295
    %660 = vmatpush.msra.mxu0 %v291
    %661 = vmatpush.msra.mxu0 %v287
    %662 = vmatpush.msra.mxu0 %v283
    %663 = vmatpush.msra.mxu0 %v279
    %664 = vmatpush.msra.mxu0 %v275
    %665 = vmatpush.msra.mxu0 %v271
    %666 = vmatpush.msra.mxu0 %v267
    %667 = vmatpush.msra.mxu0 %v263
    %668 = vmatpush.msra.mxu0 %v259
    %669 = vmatpush.msra.mxu0 %v255
    %670 = vmatpush.msra.mxu0 %v251
    %671 = vmatmul.f32.gmra.mxu0 %v81
    %v672 = vpop.f32.mrf.mxu0
    %v673 = vadd.f32 0.0, %v672
    %674 = vdwg.mxu0
    %675 = vmatpush.msra.mxu0 %v244
    %676 = vmatpush.msra.mxu0 %v240
    %677 = vmatpush.msra.mxu0 %v236
    %678 = vmatpush.msra.mxu0 %v232
    %679 = vmatpush.msra.mxu0 %v228
    %680 = vmatpush.msra.mxu0 %v224
    %681 = vmatpush.msra.mxu0 %v220
    %682 = vmatpush.msra.mxu0 %v216
    %683 = vmatpush.msra.mxu0 %v212
    %684 = vmatpush.msra.mxu0 %v208
    %685 = vmatpush.msra.mxu0 %v204
    %686 = vmatpush.msra.mxu0 %v200
    %687 = vmatpush.msra.mxu0 %v196
    %688 = vmatpush.msra.mxu0 %v192
    %689 = vmatpush.msra.mxu0 %v188
    %690 = vmatpush.msra.mxu0 %v184
    %691 = vmatmul.f32.gmra.mxu0 %v594
    %v692 = vpop.f32.mrf.mxu0
    %v693 = vadd.f32 %v613, %v692
    %694 = vdwg.mxu0
    %695 = vmatpush.msra.mxu0 %v245
    %696 = vmatpush.msra.mxu0 %v241
    %697 = vmatpush.msra.mxu0 %v237
    %698 = vmatpush.msra.mxu0 %v233
    %699 = vmatpush.msra.mxu0 %v229
    %700 = vmatpush.msra.mxu0 %v225
    %701 = vmatpush.msra.mxu0 %v221
    %702 = vmatpush.msra.mxu0 %v217
    %703 = vmatpush.msra.mxu0 %v213
    %704 = vmatpush.msra.mxu0 %v209
    %705 = vmatpush.msra.mxu0 %v205
    %706 = vmatpush.msra.mxu0 %v201
    %707 = vmatpush.msra.mxu0 %v197
    %708 = vmatpush.msra.mxu0 %v193
    %709 = vmatpush.msra.mxu0 %v189
    %710 = vmatpush.msra.mxu0 %v185
    %711 = vmatmul.f32.gmra.mxu0 %v594
    %v712 = vpop.f32.mrf.mxu0
    %v713 = vadd.f32 %v633, %v712
    %714 = vdwg.mxu0
    %715 = vmatpush.msra.mxu0 %v246
    %716 = vmatpush.msra.mxu0 %v242
    %717 = vmatpush.msra.mxu0 %v238
    %718 = vmatpush.msra.mxu0 %v234
    %719 = vmatpush.msra.mxu0 %v230
    %720 = vmatpush.msra.mxu0 %v226
    %721 = vmatpush.msra.mxu0 %v222
    %722 = vmatpush.msra.mxu0 %v218
    %723 = vmatpush.msra.mxu0 %v214
    %724 = vmatpush.msra.mxu0 %v210
    %725 = vmatpush.msra.mxu0 %v206
    %726 = vmatpush.msra.mxu0 %v202
    %727 = vmatpush.msra.mxu0 %v198
    %728 = vmatpush.msra.mxu0 %v194
    %729 = vmatpush.msra.mxu0 %v190
    %730 = vmatpush.msra.mxu0 %v186
    %731 = vmatmul.f32.gmra.mxu0 %v594
    %v732 = vpop.f32.mrf.mxu0
    %v733 = vadd.f32 %v653, %v732
    %734 = vdwg.mxu0
    %735 = vmatpush.msra.mxu0 %v247
    %736 = vmatpush.msra.mxu0 %v243
    %737 = vmatpush.msra.mxu0 %v239
    %738 = vmatpush.msra.mxu0 %v235
    %739 = vmatpush.msra.mxu0 %v231
    %740 = vmatpush.msra.mxu0 %v227
    %741 = vmatpush.msra.mxu0 %v223
    %742 = vmatpush.msra.mxu0 %v219
    %743 = vmatpush.msra.mxu0 %v215
    %744 = vmatpush.msra.mxu0 %v211
    %745 = vmatpush.msra.mxu0 %v207
    %746 = vmatpush.msra.mxu0 %v203
    %747 = vmatpush.msra.mxu0 %v199
    %748 = vmatpush.msra.mxu0 %v195
    %749 = vmatpush.msra.mxu0 %v191
    %750 = vmatpush.msra.mxu0 %v187
    %751 = vmatmul.f32.gmra.mxu0 %v594
    %v752 = vpop.f32.mrf.mxu0
    %v753 = vadd.f32 %v673, %v752
    %754 = vdwg.mxu0
    %v755 = vadd.f32 %v693, %v331
    %v756 = vadd.f32 %v713, %v351
    %v757 = vadd.f32 %v733, %v371
    %v758 = vadd.f32 %v753, %v391
    %v760 = vperm.slane %v312, 0
    %v761 = vperm.slane %v312, 1
    %v762 = vperm.slane %v312, 2
    %v763 = vperm.slane %v312, 3
    %v768 = vadd.f32 %v755, %v760
    %v769 = vadd.f32 %v756, %v761
    %v770 = vadd.f32 %v757, %v762
    %v771 = vadd.f32 %v758, %v763
    %v772 = vxor.u32 %v768, 2147483648
    %v773 = vmul.f32 %v772, 1.442695
    %v774 = vpow.pop %v773
    %v775 = vadd.f32 %v774, 1.0
    %v776 = vrcp.pop %v775
    %v777 = vmul.f32 %v775, %v776
    %v778 = vsub.f32 1.0, %v777
    %v779 = vmul.f32 %v776, %v778
    %v780 = vadd.f32 %v776, %v779
    %vm781 = vweird.f32 %v775
    %vm782 = vweird.f32 %v776
    %vm783 = vmor %vm781, %vm782
    %v784 = vsel %vm783, %v776, %v780
    %v785 = vand.u32 2147483647, %v775
    %vm786 = vcmp.eq.f32.partialorder %v785, 8.507059e+37
    %v787 = vand.u32 %v775, 2147483648
    %v788 = vor.u32 1.1754944e-38, %v787
    %v789 = vsel %vm786, %v788, %v784
    %v790 = vmul.f32 1.0, %v789
    %v791 = vxor.u32 %v769, 2147483648
    %v792 = vmul.f32 %v791, 1.442695
    %v793 = vpow.pop %v792
    %v794 = vadd.f32 %v793, 1.0
    %v795 = vrcp.pop %v794
    %v796 = vmul.f32 %v794, %v795
    %v797 = vsub.f32 1.0, %v796
    %v798 = vmul.f32 %v795, %v797
    %v799 = vadd.f32 %v795, %v798
    %vm800 = vweird.f32 %v794
    %vm801 = vweird.f32 %v795
    %vm802 = vmor %vm800, %vm801
    %v803 = vsel %vm802, %v795, %v799
    %v804 = vand.u32 2147483647, %v794
    %vm805 = vcmp.eq.f32.partialorder %v804, 8.507059e+37
    %v806 = vand.u32 %v794, 2147483648
    %v807 = vor.u32 1.1754944e-38, %v806
    %v808 = vsel %vm805, %v807, %v803
    %v809 = vmul.f32 1.0, %v808
    %v810 = vtanh.pop %v770
    %v811 = vxor.u32 %v771, 2147483648
    %v812 = vmul.f32 %v811, 1.442695
    %v813 = vpow.pop %v812
    %v814 = vadd.f32 %v813, 1.0
    %v815 = vrcp.pop %v814
    %v816 = vmul.f32 %v814, %v815
    %v817 = vsub.f32 1.0, %v816
    %v818 = vmul.f32 %v815, %v817
    %v819 = vadd.f32 %v815, %v818
    %vm820 = vweird.f32 %v814
    %vm821 = vweird.f32 %v815
    %vm822 = vmor %vm820, %vm821
    %v823 = vsel %vm822, %v815, %v819
    %v824 = vand.u32 2147483647, %v814
    %vm825 = vcmp.eq.f32.partialorder %v824, 8.507059e+37
    %v826 = vand.u32 %v814, 2147483648
    %v827 = vor.u32 1.1754944e-38, %v826
    %v828 = vsel %vm825, %v827, %v823
    %v829 = vmul.f32 1.0, %v828
    %v830 = vmul.f32 %v809, %v103
    %v831 = vmul.f32 %v790, %v810
    %v832 = vadd.f32 %v830, %v831
    %v833 = vtanh.pop %v832
    %v834 = vmul.f32 %v829, %v833
    %835 = vst [vmem:[%s9] sm:$0xff] %v834
    %836 = vst [vmem:[%s10] sm:$0xff] %v832
    // Predicated region
    $region50: #{decoder_forward.2} parent=1 // pred_check
      _
    $region51: #{decoder_forward.2} parent=1 // pred_check_branch
      %838 = sbr.rel (0) target = $region53
    $region52: #{decoder_forward.2} parent=1 // pred_region
      _
    $region53: #{decoder_forward.2} parent=1 // pred_fallthru
      _
    // Predicated region
    $region54: #{decoder_forward.2} parent=1 // pred_check
      _
    $region55: #{decoder_forward.2} parent=1 // pred_check_branch
      %840 = sbr.rel (0) target = $region57
    $region56: #{decoder_forward.2} parent=1 // pred_region
      _
    $region57: #{decoder_forward.2} parent=1 // pred_fallthru
      _
    // Predicated region
    $region58: #{decoder_forward.2} parent=1 // pred_check
      _
    $region59: #{decoder_forward.2} parent=1 // pred_check_branch
      %842 = sbr.rel (0) target = $region61
    $region60: #{decoder_forward.2} parent=1 // pred_region
      _
    $region61: #{decoder_forward.2} parent=1 // pred_fallthru
      _
    // Predicated region
    $region62: #{decoder_forward.2} parent=1 // pred_check
      _
    $region63: #{decoder_forward.2} parent=1 // pred_check_branch
      %844 = sbr.rel (0) target = $region65
    $region64: #{decoder_forward.2} parent=1 // pred_region
      _
    $region65: #{decoder_forward.2} parent=1 // pred_fallthru
      _
    %845 = vsyncpa [#allocation3], 1
    %846 = vsyncpa [#allocation5], 1

</llo_original>
